<compile_context>
chip_gen: v7x
topology: tpu7x:2x2x1
jax: 0.10.0
libtpu: 0.0.40
codegen_flags: <defaults>
</compile_context>

<pallas_src>
import jax
import jax.numpy as jnp
from jax.experimental import pallas as pl
from jax.experimental.pallas import tpu as pltpu


def sent_encoder_kernel(x_ref, w_ref, b_ref, u_ref, out_ref):
    # x_ref:   (TB*L, E)   bf16   flattened embeddings for this batch tile
    # w_ref:   (E, 2*Dp)   bf16   [:, :Dp] = W_fc,  [:, Dp:] = W_fc @ W_att
    # b_ref:   (1, 2*Dp)   f32    [:, :Dp] = b_fc,  [:, Dp:] = b_fc @ W_att + b_att
    # u_ref:   (Dp, 128)   bf16   u replicated over all 128 lanes (zero rows >= D)
    # out_ref: (TB, Dp)    f32
    BL = x_ref.shape[0]
    TB, Dp = out_ref.shape
    L = BL // TB

    # Single fused MXU matmul gives both the post-fc activations and the pre-tanh
    # attention activations (fc_att folded into the weights in the wrapper).
    xz = jnp.dot(x_ref[...], w_ref[...],
                 preferred_element_type=jnp.float32) + b_ref[...]         # (BL, 2*Dp) f32
    x2 = xz[:, :Dp]                                                       # x = emb@W_fc + b_fc
    # TODO(synk): if a bundle dump shows the single-port EUP tanh binds for small D,
    #             swap in a VPU polynomial/rational tanh here.
    h = jnp.tanh(xz[:, Dp:])                                              # tanh(fc_att(x)), f32

    # Attention scores h @ u as a lane-dense MXU matmul (u replicated over 128 lanes,
    # so every result lane already holds the score -> no 1-lane masked ops downstream).
    scores = jnp.dot(h.astype(u_ref.dtype), u_ref[...],
                     preferred_element_type=jnp.float32)                  # (BL, 128) f32

    x3 = x2.reshape(TB, L, Dp)
    s3 = scores.reshape(TB, L, 128)

    # AttentionLayer quirk (faithful to PyTorch): the mask is computed on the POST-fc
    # activations, lane 0.  Padding tokens (zero embedding rows) give exactly b_fc[0]
    # on both the bf16 MXU and the f32 reference, so the exact-zero compare is stable.
    lane0 = jnp.broadcast_to(x3[:, :, 0:1], s3.shape)                     # (TB, L, 128)
    masked = jnp.where(lane0 != jnp.float32(0.0), s3, jnp.float32(-1e32))

    # Masked softmax over the sequence axis (dim=1), lane-replicated.
    m = jnp.max(masked, axis=1, keepdims=True)                            # (TB, 1, 128)
    e = jnp.exp(masked - m)                                               # (TB, L, 128)
    inv = pl.reciprocal(jnp.sum(e, axis=1, keepdims=True), approx=True)   # EUP slot
    alpha = e * inv                                                       # (TB, L, 128)
    if Dp != 128:
        alpha = jnp.tile(alpha, (1, 1, Dp // 128))                        # whole-vreg copies

    # out = (x * alpha).sum(dim=1)
    out_ref[...] = jnp.sum(x3 * alpha, axis=1)                            # (TB, Dp)


def _vmem_capacity_bytes():
    try:
        info = pltpu.get_tpu_info()
        for name in ("vmem_capacity_bytes", "vmem_size_bytes", "vmem_bytes"):
            v = getattr(info, name, None)
            if v:
                return int(v)
    except Exception:
        pass
    return 64 * 1024 * 1024            # conservative fallback (v7x per-core VMEM)


def _round_up(n, m):
    return -(-n // m) * m


def _tile_vmem_bytes(tb, L, E, Dp):
    # Rough per-grid-step VMEM byte model: double-buffered pipelined operands,
    # (double-buffered) resident weights and the f32 in-kernel intermediates.
    rows = tb * L
    x_in = 2 * _round_up(rows, 16) * _round_up(E, 128) * 2        # bf16 input block
    out = 2 * _round_up(tb, 8) * Dp * 4                           # f32 output block
    wts = 2 * (E * 2 * Dp * 2 + Dp * 128 * 2 + 2 * Dp * 4)        # w_cat, u_mat, b_cat
    inter = _round_up(rows, 8) * (5 * Dp + 6 * 128) * 4           # xz, h, score/softmax chain
    return x_in + out + wts + inter


def _pick_batch_tile(B, L, E, Dp, budget_bytes):
    cands = sorted({t for t in range(8, B + 1, 8) if B % t == 0} | {B}, reverse=True)
    fitting = [t for t in cands if _tile_vmem_bytes(t, L, E, Dp) <= budget_bytes]
    if not fitting:
        fitting = [cands[-1]]
    # Prefer the largest tile whose grid has an even number (>= 2) of steps so the
    # "parallel" batch axis splits evenly across the two TensorCores on v7x
    # (no-op for single-TC v5e/v6e).
    for t in fitting:
        steps = B // t
        if steps >= 2 and steps % 2 == 0:
            return t
    return fitting[0]


def sent_encoder_fc(sent_list, emb_table, w_fc, b_fc, w_att, b_att, u, *, tb=None):
    B, L = sent_list.shape
    E, D = w_fc.shape

    # Embedding lookup (padding_idx=0 handled by a zeroed row 0 in emb_table), gathered
    # directly in bf16 to halve the x_emb HBM round trip, pre-flattened to (B*L, E).
    x_emb = jnp.take(emb_table.astype(jnp.bfloat16), sent_list.reshape(-1), axis=0)

    # Lane-dense feature dim: pad D (= 2*hid_dim) up to a multiple of 128.
    Dp = pl.cdiv(D, 128) * 128

    # Fold fc_att into the embedding fc:
    #   z = (emb @ W_fc + b_fc) @ W_att + b_att = emb @ (W_fc @ W_att) + (b_fc @ W_att + b_att)
    w_fc32 = w_fc.astype(jnp.float32)
    w_att32 = w_att.astype(jnp.float32)
    b_fc32 = b_fc.astype(jnp.float32)
    w2 = w_fc32 @ w_att32                                   # (E, D)
    b2 = b_fc32 @ w_att32 + b_att.astype(jnp.float32)       # (D,)

    w_cat = jnp.zeros((E, 2 * Dp), jnp.float32)
    w_cat = w_cat.at[:, :D].set(w_fc32).at[:, Dp:Dp + D].set(w2)
    w_cat = w_cat.astype(jnp.bfloat16)
    b_cat = jnp.zeros((1, 2 * Dp), jnp.float32)
    b_cat = b_cat.at[0, :D].set(b_fc32).at[0, Dp:Dp + D].set(b2)
    # u replicated over all 128 lanes -> lane-dense, unmasked MXU score matmul.
    u_mat = jnp.zeros((Dp, 128), jnp.float32)
    u_mat = u_mat.at[:D, :].set(jnp.broadcast_to(u.astype(jnp.float32)[:, None], (D, 128)))
    u_mat = u_mat.astype(jnp.bfloat16)

    vmem = _vmem_capacity_bytes()
    vmem_limit = min(int(vmem * 0.75), 112 * 1024 * 1024)   # ~48 MiB v7x, ~96 MiB v5e/v6e
    if tb is None:
        tb = _pick_batch_tile(B, L, E, Dp, int(vmem_limit * 0.8))
    assert B % tb == 0, (B, tb)

    grid_spec = pltpu.PrefetchScalarGridSpec(
        num_scalar_prefetch=0,
        grid=(B // tb,),
        in_specs=[
            pl.BlockSpec((tb * L, E), lambda i: (i, 0)),     # embeddings: batch-tiled
            pl.BlockSpec((E, 2 * Dp), lambda i: (0, 0)),     # [W_fc | W_fc@W_att]  (resident)
            pl.BlockSpec((1, 2 * Dp), lambda i: (0, 0)),     # [b_fc | b_fc@W_att + b_att]
            pl.BlockSpec((Dp, 128), lambda i: (0, 0)),       # u (lane-replicated)
        ],
        out_specs=pl.BlockSpec((tb, Dp), lambda i: (i, 0)),
    )
    out_p = pl.pallas_call(
        sent_encoder_kernel,
        out_shape=jax.ShapeDtypeStruct((B, Dp), jnp.float32),
        grid_spec=grid_spec,
        compiler_params=pltpu.CompilerParams(
            dimension_semantics=("parallel",),               # megacore split on v7x
            vmem_limit_bytes=vmem_limit),
    )(x_emb, w_cat, b_cat, u_mat)
    return out_p[:, :D]


def reference_jax(sent_list, emb_table, w_fc, b_fc, w_att, b_att, u):
    # Faithful f32 JAX translation of SentEncoderFC.forward (with_attention=True).
    x = jnp.take(emb_table, sent_list, axis=0)
    x = x @ w_fc + b_fc
    mask = x[:, :, 0] != 0
    h = jnp.tanh(x @ w_att + b_att)
    tmp = jnp.einsum('bld,d->bl', h, u)
    masked = jnp.where(mask, tmp, -1e32)
    alpha = jax.nn.softmax(masked, axis=1)
    return jnp.sum(x * alpha[:, :, None], axis=1)


if __name__ == "__main__":
    B, L, E, H = 16, 8, 32, 16          # batch, seq len, emb_dim, hid_dim
    D = 2 * H                           # SentEncoderFC output feature dim
    VOCAB = 20

    key = jax.random.PRNGKey(0)
    k_emb, k_wfc, k_bfc, k_watt, k_batt, k_u, k_tok = jax.random.split(key, 7)

    emb_table = jax.random.normal(k_emb, (VOCAB, E), jnp.float32) * 0.1
    emb_table = emb_table.at[0].set(0.0)          # padding_idx=0
    w_fc = jax.random.normal(k_wfc, (E, D), jnp.float32) * 0.1
    b_fc = jax.random.normal(k_bfc, (D,), jnp.float32) * 0.1
    w_att = jax.random.normal(k_watt, (D, D), jnp.float32) * 0.1
    b_att = jax.random.normal(k_batt, (D,), jnp.float32) * 0.1
    u = jax.random.normal(k_u, (D,), jnp.float32)

    sent_list = jax.random.randint(k_tok, (B, L), 1, VOCAB, jnp.int32)
    sent_list = sent_list.at[:, L - 2:].set(0)    # some padding tokens

    out = sent_encoder_fc(sent_list, emb_table, w_fc, b_fc, w_att, b_att, u)
    out = jax.block_until_ready(out)

    ref = reference_jax(sent_list, emb_table, w_fc, b_fc, w_att, b_att, u)
    assert out.shape == (B, D)
    # bf16 MXU operands (+ the W_fc@W_att fold) vs an all-f32 reference: allow bf16-level
    # tolerance; the exact-zero mask decisions are identical by construction.
    max_err = jnp.max(jnp.abs(out - ref))
    assert jnp.allclose(out, ref, rtol=3e-2, atol=5e-3), (max_err, out, ref)

    print("KERNEL_OK")
</pallas_src>

<mosaic_0001>
module attributes {stable_mosaic.version = 11 : i64} {
  func.func @sent_encoder_kernel(%arg0: i32, %arg1: memref<64x32xbf16, #tpu.memory_space<vmem>>, %arg2: memref<32x256xbf16, #tpu.memory_space<vmem>>, %arg3: memref<1x256xf32, #tpu.memory_space<vmem>>, %arg4: memref<128x128xbf16, #tpu.memory_space<vmem>>, %arg5: memref<8x128xf32, #tpu.memory_space<vmem>>) attributes {dimension_semantics = [#tpu.dimension_semantics<parallel>], iteration_bounds = array<i64: 2>, scalar_prefetch = 0 : i64, scratch_operands = 0 : i64, tpu.core_type = #tpu.core_type<tc>, window_params = [{transform_indices = @transform_0, window_bounds = array<i64: 64, 32>}, {pipeline_mode = #tpu.pipeline_mode<synchronous>, transform_indices = @transform_1, window_bounds = array<i64: 32, 256>}, {pipeline_mode = #tpu.pipeline_mode<synchronous>, transform_indices = @transform_2, window_bounds = array<i64: 1, 256>}, {pipeline_mode = #tpu.pipeline_mode<synchronous>, transform_indices = @transform_3, window_bounds = array<i64: 128, 128>}, {transform_indices = @transform_4, window_bounds = array<i64: 8, 128>}]} {
    %c0 = arith.constant 0 : index
    %c0_0 = arith.constant 0 : index
    %0 = vector.load %arg1[%c0, %c0_0] : memref<64x32xbf16, #tpu.memory_space<vmem>>, vector<64x32xbf16>
    %c0_1 = arith.constant 0 : index
    %c0_2 = arith.constant 0 : index
    %1 = vector.load %arg2[%c0_1, %c0_2] : memref<32x256xbf16, #tpu.memory_space<vmem>>, vector<32x256xbf16>
    %cst = arith.constant dense<0.000000e+00> : vector<64x256xf32>
    %2 = tpu.matmul %0, %1, %cst {dimension_numbers = #tpu.dot_dimension_numbers<[1], [0], [0], [1], [0, 0, 1, 1], [], []>} : vector<64x32xbf16>, vector<32x256xbf16>, vector<64x256xf32> -> vector<64x256xf32>
    %c0_3 = arith.constant 0 : index
    %c0_4 = arith.constant 0 : index
    %3 = vector.load %arg3[%c0_3, %c0_4] : memref<1x256xf32, #tpu.memory_space<vmem>>, vector<1x256xf32>
    %4 = vector.broadcast %3 : vector<1x256xf32> to vector<64x256xf32>
    %5 = arith.addf %2, %4 : vector<64x256xf32>
    %6 = vector.extract_strided_slice %5 {offsets = [0, 0], sizes = [64, 128], strides = [1, 1]} : vector<64x256xf32> to vector<64x128xf32>
    %7 = vector.extract_strided_slice %5 {offsets = [0, 128], sizes = [64, 128], strides = [1, 1]} : vector<64x256xf32> to vector<64x128xf32>
    %8 = math.tanh %7 : vector<64x128xf32>
    %9 = arith.truncf %8 : vector<64x128xf32> to vector<64x128xbf16>
    %c0_5 = arith.constant 0 : index
    %c0_6 = arith.constant 0 : index
    %10 = vector.load %arg4[%c0_5, %c0_6] : memref<128x128xbf16, #tpu.memory_space<vmem>>, vector<128x128xbf16>
    %cst_7 = arith.constant dense<0.000000e+00> : vector<64x128xf32>
    %11 = tpu.matmul %9, %10, %cst_7 {dimension_numbers = #tpu.dot_dimension_numbers<[1], [0], [0], [1], [0, 0, 1, 1], [], []>} : vector<64x128xbf16>, vector<128x128xbf16>, vector<64x128xf32> -> vector<64x128xf32>
    %12 = vector.shape_cast %6 : vector<64x128xf32> to vector<8x8x128xf32>
    %13 = vector.shape_cast %11 : vector<64x128xf32> to vector<8x8x128xf32>
    %14 = vector.extract_strided_slice %12 {offsets = [0, 0, 0], sizes = [8, 8, 1], strides = [1, 1, 1]} : vector<8x8x128xf32> to vector<8x8x1xf32>
    %15 = vector.shape_cast %14 : vector<8x8x1xf32> to vector<8x8x1xf32>
    %16 = vector.broadcast %15 : vector<8x8x1xf32> to vector<8x8x128xf32>
    %cst_8 = arith.constant 0.000000e+00 : f32
    %17 = vector.broadcast %cst_8 : f32 to vector<8x8x128xf32>
    %18 = arith.cmpf one, %16, %17 : vector<8x8x128xf32>
    %cst_9 = arith.constant -1.000000e+32 : f32
    %19 = vector.broadcast %cst_9 : f32 to vector<8x8x128xf32>
    %20 = arith.select %18, %13, %19 : vector<8x8x128xi1>, vector<8x8x128xf32>
    %cst_10 = arith.constant dense<0xFF800000> : vector<8x128xf32>
    %21 = vector.multi_reduction <maximumf>, %20, %cst_10 [1] : vector<8x8x128xf32> to vector<8x128xf32>
    %22 = vector.shape_cast %21 : vector<8x128xf32> to vector<8x1x128xf32>
    %23 = vector.broadcast %22 : vector<8x1x128xf32> to vector<8x8x128xf32>
    %24 = arith.subf %20, %23 : vector<8x8x128xf32>
    %25 = math.exp %24 : vector<8x8x128xf32>
    %cst_11 = arith.constant dense<0.000000e+00> : vector<8x128xf32>
    %26 = vector.multi_reduction <add>, %25, %cst_11 [1] : vector<8x8x128xf32> to vector<8x128xf32>
    %27 = vector.shape_cast %26 : vector<8x128xf32> to vector<8x1x128xf32>
    %28 = tpu.reciprocal %27 {approx = true} : vector<8x1x128xf32> -> vector<8x1x128xf32>
    %29 = vector.broadcast %28 : vector<8x1x128xf32> to vector<8x8x128xf32>
    %30 = arith.mulf %25, %29 : vector<8x8x128xf32>
    %31 = arith.mulf %12, %30 : vector<8x8x128xf32>
    %cst_12 = arith.constant dense<0.000000e+00> : vector<8x128xf32>
    %32 = vector.multi_reduction <add>, %31, %cst_12 [1] : vector<8x8x128xf32> to vector<8x128xf32>
    %c0_13 = arith.constant 0 : index
    %c0_14 = arith.constant 0 : index
    %33 = vector.load %arg5[%c0_13, %c0_14] : memref<8x128xf32, #tpu.memory_space<vmem>>, vector<8x128xf32>
    tpu.vector_store %arg5[%c0_13, %c0_14], %32 {strides = array<i32>} : memref<8x128xf32, #tpu.memory_space<vmem>>, vector<8x128xf32>,
    return
  }
  func.func @transform_0(%arg0: i32) -> (i32, i32) {
    %c0_i32 = arith.constant 0 : i32
    %c0_i32_0 = arith.constant 0 : i32
    return %arg0, %c0_i32 : i32, i32
  }
  func.func @transform_1(%arg0: i32) -> (i32, i32) {
    %c0_i32 = arith.constant 0 : i32
    %c0_i32_0 = arith.constant 0 : i32
    %c0_i32_1 = arith.constant 0 : i32
    return %c0_i32, %c0_i32_0 : i32, i32
  }
  func.func @transform_2(%arg0: i32) -> (i32, i32) {
    %c0_i32 = arith.constant 0 : i32
    %c0_i32_0 = arith.constant 0 : i32
    %c0_i32_1 = arith.constant 0 : i32
    return %c0_i32, %c0_i32_0 : i32, i32
  }
  func.func @transform_3(%arg0: i32) -> (i32, i32) {
    %c0_i32 = arith.constant 0 : i32
    %c0_i32_0 = arith.constant 0 : i32
    %c0_i32_1 = arith.constant 0 : i32
    return %c0_i32, %c0_i32_0 : i32, i32
  }
  func.func @transform_4(%arg0: i32) -> (i32, i32) {
    %c0_i32 = arith.constant 0 : i32
    %c0_i32_0 = arith.constant 0 : i32
    return %arg0, %c0_i32 : i32, i32
  }
}

</mosaic_0001>

<llo_original>
// kernel: tpu_custom_call.1
$region0: #{tpu_custom_call.1}
  #allocation0 [shape = 'u32[]', space=smem, size = 0x4, offset = 0x4, fixed_abs, tag = 'smem constant byte address 0x4 - core index']
  #allocation1 [shape = 'u32[144,128]{1,0:T(1,128)}', space=vmem, size = 0x12000, scoped, tag = 'internal scratch']
  %s0 = inlined_call_operand.vmem [shape: bf16[128,32], index: 0, kind: input, shape index: {}]
  %s1 = inlined_call_operand.hbm [shape: bf16[32,256], index: 1, kind: input, shape index: {}]
  %s2 = inlined_call_operand.vmem [shape: f32[1,256], index: 2, kind: input, shape index: {}]
  %s3 = inlined_call_operand.vmem [shape: bf16[128,128], index: 3, kind: input, shape index: {}]
  %s4 = inlined_call_operand.hbm [shape: f32[16,128], index: 4, kind: output, shape index: {}]
  %s5 = sld [smem:[#allocation0]]
  $region53: #{tpu_custom_call.1} parent=0
    _
  %s7 = ssub.s32 1, %s5
  %s8 = scalar_select 0, %s7, %s5
  $region1: #{tpu_custom_call.1} parent=0
    #allocation2 [shape = 'u8[16384]{0}', space=vmem, size = 0x4000, scoped, tag = 'input window, operand 1, single buffered']
    #allocation3 [shape = 's32[2]{0}', space=sflag, size = 0x8, scoped, tag = 'scoped memory for tpu_custom_call.1']
    #allocation4 [shape = 's32[2]{0}', space=sflag, size = 0x8, scoped, tag = 'scoped memory for tpu_custom_call.1']
    #allocation5 [shape = 'u8[8192]{0}', space=vmem, size = 0x2000, scoped, tag = 'output window, operand 0']
    %9 = vsyncpa [#allocation3], 0
    %10 = vsyncpa [#allocation4], 0
    %s11 = scalar_lea.sflag [#allocation4], 1
    %12 = vsyncpa %s11, 0
    loop: start=0, step=1, limit=4
    $region2: #{tpu_custom_call.1} parent=1 // loop_pre_header
      _
    $region3: #{tpu_custom_call.1} parent=1 // loop_header
      %s14 = sphi 0, %s18
      %p15 = scmp.ge.s32.totalorder %s14, 4
      %s24 = sphi 0, %s26
      %s27 = sphi 0, %s24
      %s28 = sphi 0, %s27
      %s44 = sphi 0, %s28
      %s48 = sphi 0, %s48
      %s50 = sphi 0, %s48
      %s51 = sphi 0, %s50
      %s65 = sphi 0, %s51
      %s69 = sphi 0, %s69
      %s71 = sphi 0, %s69
      %s72 = sphi 0, %s71
      %s86 = sphi 0, %s72
      %s90 = sphi 0, %s90
      %s92 = sphi 0, %s90
      %s93 = sphi 0, %s92
      %s107 = sphi 0, %s93
      %s113 = sphi 0, %s115
      %s116 = sphi 0, %s113
      %s117 = sphi 0, %s116
      %s133 = sphi 0, %s117
    $region4: #{tpu_custom_call.1} parent=1 // loop_header_branch
      %17 = sbr.rel (%p15) target = $region8
    $region5: #{tpu_custom_call.1} parent=1 // loop_body
      %s19 = ssub.s32 %s14, 1
      %s20 = ssub.s32 %s14, 2
      %s21 = sadd.s32 %s14, 1
      %s22 = ssub.s32 %s14, %s21
      %p23 = scmp.eq.s32.totalorder %s22, 0
      %s25 = sadd.s32 %s24, 1
      %s26 = scalar_select %p23, %s24, %s25
      %p29 = pneg %p23
      %p30 = scmp.eq.s32.totalorder %s14, 1
      %p31 = por %p29, %p30
      %p32 = scmp.ne.s32.totalorder %s24, %s27
      %p33 = scmp.eq.s32.totalorder %s14, 0
      %p34 = por %p32, %p33
      %p35 = scmp.ne.s32.totalorder %s24, %s27
      %p36 = scmp.eq.s32.totalorder %s19, 1
      %p37 = por %p35, %p36
      %p38 = scmp.ne.s32.totalorder %s27, %s28
      %p39 = scmp.eq.s32.totalorder %s19, 0
      %p40 = por %p38, %p39
      %p41 = scmp.ne.s32.totalorder %s27, %s28
      %p42 = scmp.eq.s32.totalorder %s20, 1
      %p43 = por %p41, %p42
      %p45 = scmp.ne.s32.totalorder %s28, %s44
      %p46 = scmp.eq.s32.totalorder %s20, 0
      %p47 = por %p45, %p46
      %s49 = sadd.s32 %s48, 1
      %p52 = scmp.eq.s32.totalorder %s14, 1
      %p53 = scmp.ne.s32.totalorder %s48, %s50
      %p54 = scmp.eq.s32.totalorder %s14, 0
      %p55 = por %p53, %p54
      %p56 = scmp.ne.s32.totalorder %s48, %s50
      %p57 = scmp.eq.s32.totalorder %s19, 1
      %p58 = por %p56, %p57
      %p59 = scmp.ne.s32.totalorder %s50, %s51
      %p60 = scmp.eq.s32.totalorder %s19, 0
      %p61 = por %p59, %p60
      %p62 = scmp.ne.s32.totalorder %s50, %s51
      %p63 = scmp.eq.s32.totalorder %s20, 1
      %p64 = por %p62, %p63
      %p66 = scmp.ne.s32.totalorder %s51, %s65
      %p67 = scmp.eq.s32.totalorder %s20, 0
      %p68 = por %p66, %p67
      %s70 = sadd.s32 %s69, 1
      %p73 = scmp.eq.s32.totalorder %s14, 1
      %p74 = scmp.ne.s32.totalorder %s69, %s71
      %p75 = scmp.eq.s32.totalorder %s14, 0
      %p76 = por %p74, %p75
      %p77 = scmp.ne.s32.totalorder %s69, %s71
      %p78 = scmp.eq.s32.totalorder %s19, 1
      %p79 = por %p77, %p78
      %p80 = scmp.ne.s32.totalorder %s71, %s72
      %p81 = scmp.eq.s32.totalorder %s19, 0
      %p82 = por %p80, %p81
      %p83 = scmp.ne.s32.totalorder %s71, %s72
      %p84 = scmp.eq.s32.totalorder %s20, 1
      %p85 = por %p83, %p84
      %p87 = scmp.ne.s32.totalorder %s72, %s86
      %p88 = scmp.eq.s32.totalorder %s20, 0
      %p89 = por %p87, %p88
      %s91 = sadd.s32 %s90, 1
      %p94 = scmp.eq.s32.totalorder %s14, 1
      %p95 = scmp.ne.s32.totalorder %s90, %s92
      %p96 = scmp.eq.s32.totalorder %s14, 0
      %p97 = por %p95, %p96
      %p98 = scmp.ne.s32.totalorder %s90, %s92
      %p99 = scmp.eq.s32.totalorder %s19, 1
      %p100 = por %p98, %p99
      %p101 = scmp.ne.s32.totalorder %s92, %s93
      %p102 = scmp.eq.s32.totalorder %s19, 0
      %p103 = por %p101, %p102
      %p104 = scmp.ne.s32.totalorder %s92, %s93
      %p105 = scmp.eq.s32.totalorder %s20, 1
      %p106 = por %p104, %p105
      %p108 = scmp.ne.s32.totalorder %s93, %s107
      %p109 = scmp.eq.s32.totalorder %s20, 0
      %p110 = por %p108, %p109
      %s111 = ssub.s32 %s14, %s21
      %p112 = scmp.eq.s32.totalorder %s111, 0
      %s114 = sadd.s32 %s113, 1
      %s115 = scalar_select %p112, %s113, %s114
      %p118 = pneg %p112
      %p119 = scmp.eq.s32.totalorder %s14, 1
      %p120 = por %p118, %p119
      %p121 = scmp.ne.s32.totalorder %s113, %s116
      %p122 = scmp.eq.s32.totalorder %s14, 0
      %p123 = por %p121, %p122
      %p124 = scmp.ne.s32.totalorder %s113, %s116
      %p125 = scmp.eq.s32.totalorder %s19, 1
      %p126 = por %p124, %p125
      %p127 = scmp.ne.s32.totalorder %s116, %s117
      %p128 = scmp.eq.s32.totalorder %s19, 0
      %p129 = por %p127, %p128
      %p130 = scmp.ne.s32.totalorder %s116, %s117
      %p131 = scmp.eq.s32.totalorder %s20, 1
      %p132 = por %p130, %p131
      %p134 = scmp.ne.s32.totalorder %s117, %s133
      %p135 = scmp.eq.s32.totalorder %s20, 0
      %p136 = por %p134, %p135
      %p137 = scmp.le.s32.totalorder 1, %s14
      %p138 = scmp.lt.s32.totalorder %s14, 3
      %p139 = pnand %p137, %p138
      %p140 = pneg %p139
      // Predicated region
      $region9: #{tpu_custom_call.1} parent=5 // pred_check
        _
      $region10: #{tpu_custom_call.1} parent=5 // pred_check_branch
        %142 = sbr.rel (%p139) target = $region12
      $region11: #{tpu_custom_call.1} parent=5 // pred_region
        %s143 = ssub.s32 %s14, 1
        // Predicated region
        $region13: #{tpu_custom_call.1} parent=11 // pred_check
          %p144 = pneg %p61
        $region14: #{tpu_custom_call.1} parent=11 // pred_check_branch
          %146 = sbr.rel (%p144) target = $region16
        $region15: #{tpu_custom_call.1} parent=11 // pred_region
          %s148 = ssub.s32 512, 512
          %149 = vsyncadd [#allocation3], %s148
          %s150 = sshll.u32 [#allocation2], 4
          %s151 = int_to_ptr.vmem [resolvable:$true] %s150
          %156 = dma.hbm_to_vmem [thread:$0]  %s1, 512, %s151, [#allocation3], 128, 128, 8
        $region16: #{tpu_custom_call.1} parent=11 // pred_fallthru
          _
        // Predicated region
        $region17: #{tpu_custom_call.1} parent=11 // pred_check
          %p157 = pneg %p82
        $region18: #{tpu_custom_call.1} parent=11 // pred_check_branch
          %159 = sbr.rel (%p157) target = $region20
        $region19: #{tpu_custom_call.1} parent=11 // pred_region
          _
        $region20: #{tpu_custom_call.1} parent=11 // pred_fallthru
          _
        // Predicated region
        $region21: #{tpu_custom_call.1} parent=11 // pred_check
          %p160 = pneg %p103
        $region22: #{tpu_custom_call.1} parent=11 // pred_check_branch
          %162 = sbr.rel (%p160) target = $region24
        $region23: #{tpu_custom_call.1} parent=11 // pred_region
          _
        $region24: #{tpu_custom_call.1} parent=11 // pred_fallthru
          _
      $region12: #{tpu_custom_call.1} parent=5 // pred_fallthru
        _
      %p163 = scmp.lt.s32.totalorder %s14, 2
      // Predicated region
      $region25: #{tpu_custom_call.1} parent=5 // pred_check
        %p164 = pneg %p163
      $region26: #{tpu_custom_call.1} parent=5 // pred_check_branch
        %166 = sbr.rel (%p164) target = $region28
      $region27: #{tpu_custom_call.1} parent=5 // pred_region
        // Predicated region
        $region29: #{tpu_custom_call.1} parent=27 // pred_check
          %p167 = pneg %p34
        $region30: #{tpu_custom_call.1} parent=27 // pred_check_branch
          %169 = sbr.rel (%p167) target = $region32
        $region31: #{tpu_custom_call.1} parent=27 // pred_region
          %s170 = smul.u32 8, %s14
          %p171 = scmp.lt.s32.totalorder %s170, 15
          %s172 = scalar_select %p171, %s170, 15
          %s173 = smul.addr %s172, 4
          %s174 = scalar_lea.vmem %s0, %s173
          %s175 = smul.u32 8, %s14
        $region32: #{tpu_custom_call.1} parent=27 // pred_fallthru
          _
      $region28: #{tpu_custom_call.1} parent=5 // pred_fallthru
        _
      %p176 = scmp.le.s32.totalorder 1, %s14
      %p177 = scmp.lt.s32.totalorder %s14, 3
      %p178 = pnand %p176, %p177
      %p179 = pneg %p178
      // Predicated region
      $region33: #{tpu_custom_call.1} parent=5 // pred_check
        _
      $region34: #{tpu_custom_call.1} parent=5 // pred_check_branch
        %181 = sbr.rel (%p178) target = $region36
      $region35: #{tpu_custom_call.1} parent=5 // pred_region
        %s182 = ssub.s32 %s14, 1
        // Predicated region
        $region37: #{tpu_custom_call.1} parent=35 // pred_check
          %p183 = pneg %p61
        $region38: #{tpu_custom_call.1} parent=35 // pred_check_branch
          %185 = sbr.rel (%p183) target = $region40
        $region39: #{tpu_custom_call.1} parent=35 // pred_region
          %186 = dma.done [#allocation3], 512
        $region40: #{tpu_custom_call.1} parent=35 // pred_fallthru
          _
        %s187 = smul.u32 8, %s19
        %p188 = scmp.lt.s32.totalorder %s187, 15
        %s189 = scalar_select %p188, %s187, 15
        %s190 = smul.addr %s189, 4
        %s191 = scalar_lea.vmem %s0, %s190
        %p192 = pneg %p40
        %p193 = pneg %p37
        %p194 = pneg %p61
        %p195 = pneg %p58
        %p196 = pneg %p82
        %p197 = pneg %p79
        %p198 = pneg %p103
        %p199 = pneg %p100
        %p200 = pneg %p129
        %p201 = pneg %p126
        %s202 = sand.u32 %s116, 1
        %s203 = scalar_lea.sflag [#allocation4], %s202
        %s204 = sand.u32 %s116, 1
        %s205 = smul.addr %s204, 8
        %s206 = scalar_lea.vmem [#allocation5], %s205
        %s207 = smul.u32 8, %s19
        %p208 = scmp.lt.s32.totalorder %s207, 15
        %s209 = scalar_select %p208, %s207, 15
        %s210 = smul.addr %s209, 4
        %s211 = scalar_lea.vmem %s0, %s210
        %s212 = smul.u32 8, %s19
        %v214 = vld [vmem:[%s211] sm:$0xf]
        %v215 = vld [vmem:[%s211 + $0x4] sm:$0xf]
        %v216 = vld [vmem:[%s211 + $0x8] sm:$0xf]
        %v217 = vld [vmem:[%s211 + $0xc] sm:$0xf]
        %v218 = vld [vmem:[%s211 + $0x10] sm:$0xf]
        %v219 = vld [vmem:[%s211 + $0x14] sm:$0xf]
        %v220 = vld [vmem:[%s211 + $0x18] sm:$0xf]
        %v221 = vld [vmem:[%s211 + $0x1c] sm:$0xf]
        %v222 = vld [vmem:[#allocation2] sm:$0xff]
        %v223 = vld [vmem:[#allocation2 + $0x8] sm:$0xff]
        %v224 = vld [vmem:[#allocation2 + $0x10] sm:$0xff]
        %v225 = vld [vmem:[#allocation2 + $0x18] sm:$0xff]
        %v226 = vld [vmem:[%s2] sm:$0x3]
        %v228 = vlaneseq
        %v229 = vshrl.u32 %v228, 7
        %v230 = vsub.s32 0, %v229
        %v231 = vrot.slane %v226, %v230
        %v232 = vlaneseq
        %v233 = vshrl.u32 %v232, 7
        %v234 = vsub.s32 1, %v233
        %v235 = vrot.slane %v226, %v234
        %v246 = vunpack.c.l.b16 %v214
        %v247 = vunpack.c.l.b16 %v215
        %v248 = vunpack.c.l.b16 %v216
        %v249 = vunpack.c.l.b16 %v217
        %v250 = vunpack.c.l.b16 %v218
        %v251 = vunpack.c.l.b16 %v219
        %v252 = vunpack.c.l.b16 %v220
        %v253 = vunpack.c.l.b16 %v221
        %v254 = vpack.c.b16 %v247, %v246
        %v255 = vpack.c.b16 %v249, %v248
        %v256 = vpack.c.b16 %v251, %v250
        %v257 = vpack.c.b16 %v253, %v252
        %v262 = vunpack.c.l.b16 %v222
        %v263 = vunpack.c.h.b16 %v222
        %v264 = vunpack.c.l.b16 %v223
        %v265 = vunpack.c.h.b16 %v223
        %v266 = vunpack.c.l.b16 %v224
        %v267 = vunpack.c.h.b16 %v224
        %v268 = vunpack.c.l.b16 %v225
        %v269 = vunpack.c.h.b16 %v225
        %v270 = vpack.c.b16 %v264, %v262
        %v271 = vpack.c.b16 %v265, %v263
        %v272 = vpack.c.b16 %v268, %v266
        %v273 = vpack.c.b16 %v269, %v267
        %vm278 = vcmask 261120
        %v280 = vsel %vm278, %v254, 0
        %v283 = vsel %vm278, %v255, 0
        %v286 = vsel %vm278, %v256, 0
        %v289 = vsel %vm278, %v257, 0
        %291 = vmatprep.subr.bf16.mxu0 %v271
        %292 = vmatpush1.bf16.msra.mxu0 %v270
        %293 = vmatprep.subr.bf16.mxu0 %v273
        %294 = vmatpush1.bf16.msra.mxu0 %v272
        %295 = vmatprep.subr.bf16.mxu0 0
        %296 = vmatpush1.bf16.msra.mxu0 0
        %297 = vmatprep.subr.bf16.mxu0 0
        %298 = vmatpush1.bf16.msra.mxu0 0
        %299 = vmatprep.subr.bf16.mxu0 0
        %300 = vmatpush1.bf16.msra.mxu0 0
        %301 = vmatprep.subr.bf16.mxu0 0
        %302 = vmatpush1.bf16.msra.mxu0 0
        %303 = vmatprep.subr.bf16.mxu0 0
        %304 = vmatpush1.bf16.msra.mxu0 0
        %305 = vmatprep.subr.bf16.mxu0 0
        %306 = vmatpush1.bf16.msra.mxu0 0
        %307 = vmatprep.subr.bf16.mxu0 0
        %308 = vmatpush1.bf16.msra.mxu0 0
        %309 = vmatprep.subr.bf16.mxu0 0
        %310 = vmatpush1.bf16.msra.mxu0 0
        %311 = vmatprep.subr.bf16.mxu0 0
        %312 = vmatpush1.bf16.msra.mxu0 0
        %313 = vmatprep.subr.bf16.mxu0 0
        %314 = vmatpush1.bf16.msra.mxu0 0
        %315 = vmatprep.subr.bf16.mxu0 0
        %316 = vmatpush1.bf16.msra.mxu0 0
        %317 = vmatprep.subr.bf16.mxu0 0
        %318 = vmatpush1.bf16.msra.mxu0 0
        %319 = vmatprep.subr.bf16.mxu0 0
        %320 = vmatpush1.bf16.msra.mxu0 0
        %321 = vmatprep.subr.bf16.mxu0 0
        %322 = vmatpush1.bf16.msra.mxu0 0
        %323 = vmatprep.mubr.bf16.mxu0 0
        %324 = vmatmul.mubr.bf16.gmra.mrb[0].mxu0 %v280
        %v325 = vpop.f32.mrb[0].mxu0
        %v326 = vadd.f32 %v231, %v325
        %v327 = vpop.f32.mrb[0].mxu0
        %v328 = vadd.f32 %v235, %v327
        %v329 = vpop.f32.mrb[0].mxu0
        %v330 = vadd.f32 %v231, %v329
        %v331 = vpop.f32.mrb[0].mxu0
        %v332 = vadd.f32 %v235, %v331
        %333 = vmatprep.mubr.bf16.mxu0 0
        %334 = vmatmul.mubr.bf16.gmra.mrb[0].mxu0 %v283
        %v335 = vpop.f32.mrb[0].mxu0
        %v336 = vadd.f32 %v231, %v335
        %v337 = vpop.f32.mrb[0].mxu0
        %v338 = vadd.f32 %v235, %v337
        %v339 = vpop.f32.mrb[0].mxu0
        %v340 = vadd.f32 %v231, %v339
        %v341 = vpop.f32.mrb[0].mxu0
        %v342 = vadd.f32 %v235, %v341
        %343 = vmatprep.mubr.bf16.mxu0 0
        %344 = vmatmul.mubr.bf16.gmra.mrb[0].mxu0 %v286
        %v345 = vpop.f32.mrb[0].mxu0
        %v346 = vadd.f32 %v231, %v345
        %v347 = vpop.f32.mrb[0].mxu0
        %v348 = vadd.f32 %v235, %v347
        %v349 = vpop.f32.mrb[0].mxu0
        %v350 = vadd.f32 %v231, %v349
        %v351 = vpop.f32.mrb[0].mxu0
        %v352 = vadd.f32 %v235, %v351
        %353 = vmatprep.mubr.bf16.mxu0 0
        %354 = vmatmul.mubr.bf16.gmra.mrb[0].mxu0 %v289
        %v355 = vpop.f32.mrb[0].mxu0
        %v356 = vadd.f32 %v231, %v355
        %v357 = vpop.f32.mrb[0].mxu0
        %v358 = vadd.f32 %v235, %v357
        %v359 = vpop.f32.mrb[0].mxu0
        %v360 = vadd.f32 %v231, %v359
        %v361 = vpop.f32.mrb[0].mxu0
        %v362 = vadd.f32 %v235, %v361
        %363 = vdwg.mxu0
        %v364 = vtanh.pop %v328
        %v365 = vtanh.pop %v332
        %v366 = vtanh.pop %v338
        %v367 = vtanh.pop %v342
        %v368 = vtanh.pop %v348
        %v369 = vtanh.pop %v352
        %v370 = vtanh.pop %v358
        %v371 = vtanh.pop %v362
        %v372 = vpack.c.bf16 %v365, %v364
        %v373 = vpack.c.bf16 %v367, %v366
        %v374 = vpack.c.bf16 %v369, %v368
        %v375 = vpack.c.bf16 %v371, %v370
        %v376 = vld [vmem:[%s3] sm:$0xf]
        %v377 = vld [vmem:[%s3 + $0x4] sm:$0xf]
        %v378 = vld [vmem:[%s3 + $0x8] sm:$0xf]
        %v379 = vld [vmem:[%s3 + $0xc] sm:$0xf]
        %v380 = vld [vmem:[%s3 + $0x10] sm:$0xf]
        %v381 = vld [vmem:[%s3 + $0x14] sm:$0xf]
        %v382 = vld [vmem:[%s3 + $0x18] sm:$0xf]
        %v383 = vld [vmem:[%s3 + $0x1c] sm:$0xf]
        %v384 = vld [vmem:[%s3 + $0x20] sm:$0xf]
        %v385 = vld [vmem:[%s3 + $0x24] sm:$0xf]
        %v386 = vld [vmem:[%s3 + $0x28] sm:$0xf]
        %v387 = vld [vmem:[%s3 + $0x2c] sm:$0xf]
        %v388 = vld [vmem:[%s3 + $0x30] sm:$0xf]
        %v389 = vld [vmem:[%s3 + $0x34] sm:$0xf]
        %v390 = vld [vmem:[%s3 + $0x38] sm:$0xf]
        %v391 = vld [vmem:[%s3 + $0x3c] sm:$0xf]
        %v408 = vunpack.c.l.b16 %v376
        %v409 = vunpack.c.l.b16 %v377
        %v410 = vunpack.c.l.b16 %v378
        %v411 = vunpack.c.l.b16 %v379
        %v412 = vunpack.c.l.b16 %v380
        %v413 = vunpack.c.l.b16 %v381
        %v414 = vunpack.c.l.b16 %v382
        %v415 = vunpack.c.l.b16 %v383
        %v416 = vunpack.c.l.b16 %v384
        %v417 = vunpack.c.l.b16 %v385
        %v418 = vunpack.c.l.b16 %v386
        %v419 = vunpack.c.l.b16 %v387
        %v420 = vunpack.c.l.b16 %v388
        %v421 = vunpack.c.l.b16 %v389
        %v422 = vunpack.c.l.b16 %v390
        %v423 = vunpack.c.l.b16 %v391
        %v424 = vpack.c.b16 %v409, %v408
        %v425 = vpack.c.b16 %v411, %v410
        %v426 = vpack.c.b16 %v413, %v412
        %v427 = vpack.c.b16 %v415, %v414
        %v428 = vpack.c.b16 %v417, %v416
        %v429 = vpack.c.b16 %v419, %v418
        %v430 = vpack.c.b16 %v421, %v420
        %v431 = vpack.c.b16 %v423, %v422
        %440 = vmatprep.subr.bf16.mxu0 0
        %441 = vmatpush1.bf16.msra.mxu0 %v424
        %442 = vmatprep.subr.bf16.mxu0 0
        %443 = vmatpush1.bf16.msra.mxu0 %v425
        %444 = vmatprep.subr.bf16.mxu0 0
        %445 = vmatpush1.bf16.msra.mxu0 %v426
        %446 = vmatprep.subr.bf16.mxu0 0
        %447 = vmatpush1.bf16.msra.mxu0 %v427
        %448 = vmatprep.subr.bf16.mxu0 0
        %449 = vmatpush1.bf16.msra.mxu0 %v428
        %450 = vmatprep.subr.bf16.mxu0 0
        %451 = vmatpush1.bf16.msra.mxu0 %v429
        %452 = vmatprep.subr.bf16.mxu0 0
        %453 = vmatpush1.bf16.msra.mxu0 %v430
        %454 = vmatprep.subr.bf16.mxu0 0
        %455 = vmatpush1.bf16.msra.mxu0 %v431
        %456 = vmatprep.subr.bf16.mxu0 0
        %457 = vmatpush1.bf16.msra.mxu0 0
        %458 = vmatprep.subr.bf16.mxu0 0
        %459 = vmatpush1.bf16.msra.mxu0 0
        %460 = vmatprep.subr.bf16.mxu0 0
        %461 = vmatpush1.bf16.msra.mxu0 0
        %462 = vmatprep.subr.bf16.mxu0 0
        %463 = vmatpush1.bf16.msra.mxu0 0
        %464 = vmatprep.subr.bf16.mxu0 0
        %465 = vmatpush1.bf16.msra.mxu0 0
        %466 = vmatprep.subr.bf16.mxu0 0
        %467 = vmatpush1.bf16.msra.mxu0 0
        %468 = vmatprep.subr.bf16.mxu0 0
        %469 = vmatpush1.bf16.msra.mxu0 0
        %470 = vmatprep.subr.bf16.mxu0 0
        %471 = vmatpush1.bf16.msra.mxu0 0
        %472 = vmatprep.mubr.bf16.mxu0 0
        %473 = vmatmul.mubr.bf16.gmra.mrb[0].mxu0 %v372
        %v474 = vpop.f32.mrb[0].mxu0
        %v475 = vadd.f32 0.0, %v474
        %v476 = vpop.f32.mrb[0].mxu0
        %v477 = vpop.f32.mrb[0].mxu0
        %v478 = vadd.f32 0.0, %v477
        %v479 = vpop.f32.mrb[0].mxu0
        %480 = vmatprep.mubr.bf16.mxu0 0
        %481 = vmatmul.mubr.bf16.gmra.mrb[0].mxu0 %v373
        %v482 = vpop.f32.mrb[0].mxu0
        %v483 = vadd.f32 0.0, %v482
        %v484 = vpop.f32.mrb[0].mxu0
        %v485 = vpop.f32.mrb[0].mxu0
        %v486 = vadd.f32 0.0, %v485
        %v487 = vpop.f32.mrb[0].mxu0
        %488 = vmatprep.mubr.bf16.mxu0 0
        %489 = vmatmul.mubr.bf16.gmra.mrb[0].mxu0 %v374
        %v490 = vpop.f32.mrb[0].mxu0
        %v491 = vadd.f32 0.0, %v490
        %v492 = vpop.f32.mrb[0].mxu0
        %v493 = vpop.f32.mrb[0].mxu0
        %v494 = vadd.f32 0.0, %v493
        %v495 = vpop.f32.mrb[0].mxu0
        %496 = vmatprep.mubr.bf16.mxu0 0
        %497 = vmatmul.mubr.bf16.gmra.mrb[0].mxu0 %v375
        %v498 = vpop.f32.mrb[0].mxu0
        %v499 = vadd.f32 0.0, %v498
        %v500 = vpop.f32.mrb[0].mxu0
        %v501 = vpop.f32.mrb[0].mxu0
        %v502 = vadd.f32 0.0, %v501
        %v503 = vpop.f32.mrb[0].mxu0
        %504 = vdwg.mxu0
        %506 = vset.pattern.permute.xlu0 0
        %507 = vperm.xlu0 %506, %v326
        %v508 = vpop.permute.xlu0 %507
        %511 = vset.pattern.permute.xlu0 0
        %512 = vperm.xlu0 %511, %v330
        %v513 = vpop.permute.xlu0 %512
        %516 = vset.pattern.permute.xlu0 0
        %517 = vperm.xlu0 %516, %v336
        %v518 = vpop.permute.xlu0 %517
        %521 = vset.pattern.permute.xlu0 0
        %522 = vperm.xlu0 %521, %v340
        %v523 = vpop.permute.xlu0 %522
        %526 = vset.pattern.permute.xlu0 0
        %527 = vperm.xlu0 %526, %v346
        %v528 = vpop.permute.xlu0 %527
        %531 = vset.pattern.permute.xlu0 0
        %532 = vperm.xlu0 %531, %v350
        %v533 = vpop.permute.xlu0 %532
        %536 = vset.pattern.permute.xlu0 0
        %537 = vperm.xlu0 %536, %v356
        %v538 = vpop.permute.xlu0 %537
        %541 = vset.pattern.permute.xlu0 0
        %542 = vperm.xlu0 %541, %v360
        %v543 = vpop.permute.xlu0 %542
        %vm545 = vcmp.ne.f32.partialorder %v508, 0.0
        %vm546 = vcmp.ne.f32.partialorder %v513, 0.0
        %vm547 = vcmp.ne.f32.partialorder %v518, 0.0
        %vm548 = vcmp.ne.f32.partialorder %v523, 0.0
        %vm549 = vcmp.ne.f32.partialorder %v528, 0.0
        %vm550 = vcmp.ne.f32.partialorder %v533, 0.0
        %vm551 = vcmp.ne.f32.partialorder %v538, 0.0
        %vm552 = vcmp.ne.f32.partialorder %v543, 0.0
        %v553 = vsel %vm545, %v475, -1e+32
        %v554 = vsel %vm546, %v478, -1e+32
        %v555 = vsel %vm547, %v483, -1e+32
        %v556 = vsel %vm548, %v486, -1e+32
        %v557 = vsel %vm549, %v491, -1e+32
        %v558 = vsel %vm550, %v494, -1e+32
        %v559 = vsel %vm551, %v499, -1e+32
        %v560 = vsel %vm552, %v502, -1e+32
        %v561 = vrot.slane %v553, 4
        %v562 = vmax.f32 %v553, %v561
        %v563 = vrot.slane %v562, 2
        %v564 = vmax.f32 %v562, %v563
        %v565 = vrot.slane %v564, 1
        %v566 = vmax.f32 %v564, %v565
        %v567 = vrot.slane %v554, 4
        %v568 = vmax.f32 %v554, %v567
        %v569 = vrot.slane %v568, 2
        %v570 = vmax.f32 %v568, %v569
        %v571 = vrot.slane %v570, 1
        %v572 = vmax.f32 %v570, %v571
        %v573 = vrot.slane %v555, 4
        %v574 = vmax.f32 %v555, %v573
        %v575 = vrot.slane %v574, 2
        %v576 = vmax.f32 %v574, %v575
        %v577 = vrot.slane %v576, 1
        %v578 = vmax.f32 %v576, %v577
        %v579 = vrot.slane %v556, 4
        %v580 = vmax.f32 %v556, %v579
        %v581 = vrot.slane %v580, 2
        %v582 = vmax.f32 %v580, %v581
        %v583 = vrot.slane %v582, 1
        %v584 = vmax.f32 %v582, %v583
        %v585 = vrot.slane %v557, 4
        %v586 = vmax.f32 %v557, %v585
        %v587 = vrot.slane %v586, 2
        %v588 = vmax.f32 %v586, %v587
        %v589 = vrot.slane %v588, 1
        %v590 = vmax.f32 %v588, %v589
        %v591 = vrot.slane %v558, 4
        %v592 = vmax.f32 %v558, %v591
        %v593 = vrot.slane %v592, 2
        %v594 = vmax.f32 %v592, %v593
        %v595 = vrot.slane %v594, 1
        %v596 = vmax.f32 %v594, %v595
        %v597 = vrot.slane %v559, 4
        %v598 = vmax.f32 %v559, %v597
        %v599 = vrot.slane %v598, 2
        %v600 = vmax.f32 %v598, %v599
        %v601 = vrot.slane %v600, 1
        %v602 = vmax.f32 %v600, %v601
        %v603 = vrot.slane %v560, 4
        %v604 = vmax.f32 %v560, %v603
        %v605 = vrot.slane %v604, 2
        %v606 = vmax.f32 %v604, %v605
        %v607 = vrot.slane %v606, 1
        %v608 = vmax.f32 %v606, %v607
        %v609 = vsub.f32 %v553, %v566
        %v610 = vsub.f32 %v554, %v572
        %v611 = vsub.f32 %v555, %v578
        %v612 = vsub.f32 %v556, %v584
        %v613 = vsub.f32 %v557, %v590
        %v614 = vsub.f32 %v558, %v596
        %v615 = vsub.f32 %v559, %v602
        %v616 = vsub.f32 %v560, %v608
        %v617 = vmul.f32 %v609, 1.442695
        %v618 = vpow.pop %v617
        %v619 = vmul.f32 %v610, 1.442695
        %v620 = vpow.pop %v619
        %v621 = vmul.f32 %v611, 1.442695
        %v622 = vpow.pop %v621
        %v623 = vmul.f32 %v612, 1.442695
        %v624 = vpow.pop %v623
        %v625 = vmul.f32 %v613, 1.442695
        %v626 = vpow.pop %v625
        %v627 = vmul.f32 %v614, 1.442695
        %v628 = vpow.pop %v627
        %v629 = vmul.f32 %v615, 1.442695
        %v630 = vpow.pop %v629
        %v631 = vmul.f32 %v616, 1.442695
        %v632 = vpow.pop %v631
        %v633 = vrot.slane %v618, 4
        %v634 = vadd.f32 %v618, %v633
        %v635 = vrot.slane %v634, 2
        %v636 = vadd.f32 %v634, %v635
        %v637 = vrot.slane %v636, 1
        %v638 = vadd.f32 %v636, %v637
        %v639 = vrot.slane %v620, 4
        %v640 = vadd.f32 %v620, %v639
        %v641 = vrot.slane %v640, 2
        %v642 = vadd.f32 %v640, %v641
        %v643 = vrot.slane %v642, 1
        %v644 = vadd.f32 %v642, %v643
        %v645 = vrot.slane %v622, 4
        %v646 = vadd.f32 %v622, %v645
        %v647 = vrot.slane %v646, 2
        %v648 = vadd.f32 %v646, %v647
        %v649 = vrot.slane %v648, 1
        %v650 = vadd.f32 %v648, %v649
        %v651 = vrot.slane %v624, 4
        %v652 = vadd.f32 %v624, %v651
        %v653 = vrot.slane %v652, 2
        %v654 = vadd.f32 %v652, %v653
        %v655 = vrot.slane %v654, 1
        %v656 = vadd.f32 %v654, %v655
        %v657 = vrot.slane %v626, 4
        %v658 = vadd.f32 %v626, %v657
        %v659 = vrot.slane %v658, 2
        %v660 = vadd.f32 %v658, %v659
        %v661 = vrot.slane %v660, 1
        %v662 = vadd.f32 %v660, %v661
        %v663 = vrot.slane %v628, 4
        %v664 = vadd.f32 %v628, %v663
        %v665 = vrot.slane %v664, 2
        %v666 = vadd.f32 %v664, %v665
        %v667 = vrot.slane %v666, 1
        %v668 = vadd.f32 %v666, %v667
        %v669 = vrot.slane %v630, 4
        %v670 = vadd.f32 %v630, %v669
        %v671 = vrot.slane %v670, 2
        %v672 = vadd.f32 %v670, %v671
        %v673 = vrot.slane %v672, 1
        %v674 = vadd.f32 %v672, %v673
        %v675 = vrot.slane %v632, 4
        %v676 = vadd.f32 %v632, %v675
        %v677 = vrot.slane %v676, 2
        %v678 = vadd.f32 %v676, %v677
        %v679 = vrot.slane %v678, 1
        %v680 = vadd.f32 %v678, %v679
        %v681 = vrcp.pop %v638
        %v682 = vrcp.pop %v644
        %v683 = vrcp.pop %v650
        %v684 = vrcp.pop %v656
        %v685 = vrcp.pop %v662
        %v686 = vrcp.pop %v668
        %v687 = vrcp.pop %v674
        %v688 = vrcp.pop %v680
        %v689 = vmul.f32 %v618, %v681
        %v690 = vmul.f32 %v620, %v682
        %v691 = vmul.f32 %v622, %v683
        %v692 = vmul.f32 %v624, %v684
        %v693 = vmul.f32 %v626, %v685
        %v694 = vmul.f32 %v628, %v686
        %v695 = vmul.f32 %v630, %v687
        %v696 = vmul.f32 %v632, %v688
        %v697 = vmul.f32 %v326, %v689
        %v698 = vmul.f32 %v330, %v690
        %v699 = vmul.f32 %v336, %v691
        %v700 = vmul.f32 %v340, %v692
        %v701 = vmul.f32 %v346, %v693
        %v702 = vmul.f32 %v350, %v694
        %v703 = vmul.f32 %v356, %v695
        %v704 = vmul.f32 %v360, %v696
        %v705 = vrot.slane %v697, 4
        %v706 = vadd.f32 %v697, %v705
        %v707 = vrot.slane %v706, 2
        %v708 = vadd.f32 %v706, %v707
        %v709 = vrot.slane %v708, 1
        %v710 = vadd.f32 %v708, %v709
        %v711 = vrot.slane %v698, 4
        %v712 = vadd.f32 %v698, %v711
        %v713 = vrot.slane %v712, 2
        %v714 = vadd.f32 %v712, %v713
        %v715 = vrot.slane %v714, 1
        %v716 = vadd.f32 %v714, %v715
        %v717 = vrot.slane %v699, 4
        %v718 = vadd.f32 %v699, %v717
        %v719 = vrot.slane %v718, 2
        %v720 = vadd.f32 %v718, %v719
        %v721 = vrot.slane %v720, 1
        %v722 = vadd.f32 %v720, %v721
        %v723 = vrot.slane %v700, 4
        %v724 = vadd.f32 %v700, %v723
        %v725 = vrot.slane %v724, 2
        %v726 = vadd.f32 %v724, %v725
        %v727 = vrot.slane %v726, 1
        %v728 = vadd.f32 %v726, %v727
        %v729 = vrot.slane %v701, 4
        %v730 = vadd.f32 %v701, %v729
        %v731 = vrot.slane %v730, 2
        %v732 = vadd.f32 %v730, %v731
        %v733 = vrot.slane %v732, 1
        %v734 = vadd.f32 %v732, %v733
        %v735 = vrot.slane %v702, 4
        %v736 = vadd.f32 %v702, %v735
        %v737 = vrot.slane %v736, 2
        %v738 = vadd.f32 %v736, %v737
        %v739 = vrot.slane %v738, 1
        %v740 = vadd.f32 %v738, %v739
        %v741 = vrot.slane %v703, 4
        %v742 = vadd.f32 %v703, %v741
        %v743 = vrot.slane %v742, 2
        %v744 = vadd.f32 %v742, %v743
        %v745 = vrot.slane %v744, 1
        %v746 = vadd.f32 %v744, %v745
        %v747 = vrot.slane %v704, 4
        %v748 = vadd.f32 %v704, %v747
        %v749 = vrot.slane %v748, 2
        %v750 = vadd.f32 %v748, %v749
        %v751 = vrot.slane %v750, 1
        %v752 = vadd.f32 %v750, %v751
        %vm761 = vcmask 1041409
        %v762 = vsel %vm761, %v716, %v710
        %vm763 = vcmask 1042434
        %v764 = vsel %vm763, %v722, %v762
        %vm765 = vcmask 1043459
        %v766 = vsel %vm765, %v728, %v764
        %vm767 = vcmask 1044484
        %v768 = vsel %vm767, %v734, %v766
        %vm769 = vcmask 1045509
        %v770 = vsel %vm769, %v740, %v768
        %vm771 = vcmask 1046534
        %v772 = vsel %vm771, %v746, %v770
        %vm773 = vcmask 1047559
        %v774 = vsel %vm773, %v752, %v772
        %776 = vst [vmem:[%s206] sm:$0xff] %v774
        %s777 = sand.u32 %s116, 1
        %s778 = scalar_lea.sflag [#allocation4], %s777
        %s779 = sand.u32 %s116, 1
        %s780 = smul.addr %s779, 8
        %s781 = scalar_lea.vmem [#allocation5], %s780
        // Predicated region
        $region41: #{tpu_custom_call.1} parent=35 // pred_check
          %p782 = pneg %p126
        $region42: #{tpu_custom_call.1} parent=35 // pred_check_branch
          %784 = sbr.rel (%p782) target = $region44
        $region43: #{tpu_custom_call.1} parent=35 // pred_region
          %s786 = ssub.s32 128, 128
          %787 = vsyncadd %s778, %s786
          %s788 = smul.addr %s19, 128
          %s789 = scalar_lea.hbm %s4, %s788
          %s791 = sshll.u32 %s781, 4
          %s792 = int_to_ptr.vmem [resolvable:$true] %s791
          %794 = dma.vmem_to_hbm [thread:$0]  %s792, 128, %s789, %s778
        $region44: #{tpu_custom_call.1} parent=35 // pred_fallthru
          _
      $region36: #{tpu_custom_call.1} parent=5 // pred_fallthru
        _
      %p795 = scmp.le.s32.totalorder 2, %s14
      // Predicated region
      $region45: #{tpu_custom_call.1} parent=5 // pred_check
        %p796 = pneg %p795
      $region46: #{tpu_custom_call.1} parent=5 // pred_check_branch
        %798 = sbr.rel (%p796) target = $region48
      $region47: #{tpu_custom_call.1} parent=5 // pred_region
        %s799 = ssub.s32 %s14, 2
        // Predicated region
        $region49: #{tpu_custom_call.1} parent=47 // pred_check
          %p800 = pneg %p132
        $region50: #{tpu_custom_call.1} parent=47 // pred_check_branch
          %802 = sbr.rel (%p800) target = $region52
        $region51: #{tpu_custom_call.1} parent=47 // pred_region
          %s803 = sand.u32 %s117, 1
          %s804 = scalar_lea.sflag [#allocation4], %s803
          %s805 = sand.u32 %s117, 1
          %s806 = smul.addr %s805, 8
          %s807 = scalar_lea.vmem [#allocation5], %s806
          %808 = dma.done %s804, 128
        $region52: #{tpu_custom_call.1} parent=47 // pred_fallthru
          _
      $region48: #{tpu_custom_call.1} parent=5 // pred_fallthru
        _
    $region6: #{tpu_custom_call.1} parent=1 // loop_footer
      %s18 = sadd.s32 1, %s14
    $region7: #{tpu_custom_call.1} parent=1 // loop_footer_branch
      %13 = sbr.rel target = $region3
    $region8: #{tpu_custom_call.1} parent=1 // loop_exit
      _
    %809 = vsyncpa [#allocation3], 1
    %s810 = scalar_lea.sflag [#allocation3], 1
    %811 = vsyncpa %s810, 1
    %812 = vsyncpa [#allocation4], 1
    %s813 = scalar_lea.sflag [#allocation4], 1
    %814 = vsyncpa %s813, 1

</llo_original>
